<compile_context>
chip_gen: v7x
topology: tpu7x:2x2x1
jax: 0.10.0
libtpu: 0.0.40
codegen_flags: <defaults>
</compile_context>

<pallas_src>
import math

import jax
import jax.numpy as jnp
from jax.experimental import pallas as pl
from jax.experimental.pallas import tpu as pltpu


# ~6 MiB per tile; 1 input + 1 output, double-buffered -> 4 buffers ~= 24 MiB.
_TILE_BUDGET_BYTES = 6 * 1024 * 1024
_VMEM_LIMIT_BYTES = 32 * 1024 * 1024
_MAX_LANE_WIDTH = 2048  # lane-dense, but keep room for >= one full sublane group of rows


def _copy_kernel(x_ref, o_ref):
    # Pure rectangular copy: full-tile, lane-dense, unmasked load + store.
    o_ref[...] = x_ref[...]


def _sublane_multiple(itemsize: int) -> int:
    # Sub-32-bit dtypes pack along sublanes; keep row blocks at the packed
    # granularity so loads/stores stay unmasked for bf16 / int8 / fp8 too.
    return {4: 8, 2: 16, 1: 32}.get(itemsize, 8)


def _choose_slab(total: int, N: int, D: int, sub: int) -> tuple[int, int]:
    """Pick a lane-dense 2-D slab (R, C) covering the flat element stream.

    Prefer C a multiple of 128 (unmasked vst) with R >= sub so row tiles fill
    whole vregs.  If the element count is not a multiple of 128, fall back to
    the natural (N, D) view and tile rows (a full-extent lane dim is always a
    legal block).
    """
    if total % 128 == 0:
        C = 128
        while (C * 2 <= _MAX_LANE_WIDTH
               and total % (C * 2) == 0
               and total // (C * 2) >= sub):
            C *= 2
        return total // C, C
    return N, D


def _pick_blocks(R: int, C: int, itemsize: int, sub: int):
    """Block shape + grid for a 2-D copy of an (R, C) array.

    Guarantees: block rows are a multiple of `sub` (or == R), block cols a
    multiple of 128 (or == C), and one tile never exceeds _TILE_BUDGET_BYTES,
    so 4 double-buffered tiles stay well under the 32 MiB VMEM limit on every
    TPU generation.
    """
    # Column block: full C when `sub` rows of it fit the budget, otherwise the
    # largest 128-multiple that still leaves room for `sub` rows.
    if C * itemsize * sub <= _TILE_BUDGET_BYTES:
        Cb = C
    else:
        Cb = max(128, (_TILE_BUDGET_BYTES // (sub * itemsize)) // 128 * 128)
        Cb = min(Cb, C)

    rows_fit = _TILE_BUDGET_BYTES // (Cb * itemsize)
    Rb = min(R, max(sub, (rows_fit // sub) * sub))

    grid_r = pl.cdiv(R, Rb)
    grid_c = pl.cdiv(C, Cb)

    # v7x has 2 TensorCores: expose >= 2 independent "parallel" blocks when
    # the input is big enough to split (neutral on single-TC v5e/v6e).
    if grid_r == 1 and grid_c == 1 and R >= 2 * sub:
        Rb = max(sub, ((pl.cdiv(R, 2) + sub - 1) // sub) * sub)
        grid_r = pl.cdiv(R, Rb)

    return Rb, Cb, grid_r, grid_c


def flatten(x: jax.Array, channels: int = -1, *, materialize: bool = False) -> jax.Array:
    """Pallas/JAX equivalent of Flatten(channels).forward(x).

    Default (`materialize=False`): zero-copy metadata reshape — the exact
    analogue of torch `.view(N, -1)` on a contiguous tensor, no HBM traffic.

    `materialize=True`: additionally runs a Pallas copy kernel that streams
    the data through VMEM at the HBM roofline (useful only when a fresh
    buffer is explicitly required).
    """
    assert x.ndim >= 2, "expected at least a (N, ...) input"
    N = x.shape[0]
    D = int(math.prod(x.shape[1:]))
    if channels != -1:
        # torch .view(N, channels) only works when channels == prod(rest)
        assert channels == D, "channels must equal prod(shape[1:]) (or -1)"

    if not materialize:
        # Fast path: flatten of a contiguous array is metadata-only.
        return jnp.reshape(x, (N, D))

    total = N * D
    itemsize = jnp.dtype(x.dtype).itemsize
    sub = _sublane_multiple(itemsize)

    R, C = _choose_slab(total, N, D, sub)
    Rb, Cb, grid_r, grid_c = _pick_blocks(R, C, itemsize, sub)

    x2 = jnp.reshape(x, (R, C))  # metadata-only relayout of the flat stream
    y2 = pl.pallas_call(
        _copy_kernel,
        out_shape=jax.ShapeDtypeStruct((R, C), x.dtype),
        grid=(grid_r, grid_c),
        in_specs=[pl.BlockSpec((Rb, Cb), lambda i, j: (i, j))],
        out_specs=pl.BlockSpec((Rb, Cb), lambda i, j: (i, j)),
        compiler_params=pltpu.CompilerParams(
            dimension_semantics=("parallel", "parallel"),
            vmem_limit_bytes=_VMEM_LIMIT_BYTES,
        ),
    )(x2)
    return jnp.reshape(y2, (N, D))


if __name__ == "__main__":
    root = jax.random.PRNGKey(0)
    k0, k1, k2, k3 = jax.random.split(root, 4)

    # Small NCHW input consistent with the module.
    x = jax.random.normal(k0, (2, 4, 16, 16), dtype=jnp.float32)
    ref = jnp.reshape(x, (x.shape[0], -1))

    # Default fast path: zero-copy reshape.
    out_fast = jax.block_until_ready(flatten(x, channels=-1))
    assert out_fast.shape == ref.shape and out_fast.dtype == ref.dtype
    assert bool(jnp.array_equal(out_fast, ref)), "mismatch vs reference (fast path)"

    # Materializing Pallas kernel path.
    out_mat = jax.block_until_ready(flatten(x, channels=-1, materialize=True))
    assert out_mat.shape == ref.shape and out_mat.dtype == ref.dtype
    assert bool(jnp.array_equal(out_mat, ref)), "mismatch vs reference (kernel path)"

    # Typical Flatten usage: right after nn.AdaptiveAvgPool2d(1) -> (N, C, 1, 1).
    y = jax.random.normal(k1, (2, 512, 1, 1), dtype=jnp.float32)
    ref_y = jnp.reshape(y, (y.shape[0], -1))
    out_y = jax.block_until_ready(flatten(y, channels=512, materialize=True))
    assert bool(jnp.array_equal(out_y, ref_y)), "mismatch vs reference (pool case)"

    # Odd, non-128-multiple shape exercises the (N, D) row-tiled fallback,
    # bf16 exercises the packed-sublane-aware block selection.
    z = jax.random.normal(k2, (2, 3, 5, 7), dtype=jnp.bfloat16)
    ref_z = jnp.reshape(z, (z.shape[0], -1))
    out_z = jax.block_until_ready(flatten(z, channels=-1, materialize=True))
    assert bool(jnp.array_equal(out_z, ref_z)), "mismatch vs reference (odd bf16 case)"

    # A slightly larger input exercises the multi-block "parallel" grid split.
    w = jax.random.normal(k3, (16, 8, 32, 128), dtype=jnp.float32)
    ref_w = jnp.reshape(w, (w.shape[0], -1))
    out_w = jax.block_until_ready(flatten(w, channels=-1, materialize=True))
    assert bool(jnp.array_equal(out_w, ref_w)), "mismatch vs reference (multi-block case)"

    print("KERNEL_OK")
</pallas_src>

<mosaic_0001>
module attributes {stable_mosaic.version = 11 : i64} {
  func.func @_copy_kernel(%arg0: i32, %arg1: i32, %arg2: memref<8x256xf32, #tpu.memory_space<vmem>>, %arg3: memref<8x256xf32, #tpu.memory_space<vmem>>) attributes {dimension_semantics = [#tpu.dimension_semantics<parallel>, #tpu.dimension_semantics<parallel>], iteration_bounds = array<i64: 1, 1>, scalar_prefetch = 0 : i64, scratch_operands = 0 : i64, tpu.core_type = #tpu.core_type<tc>, window_params = [{transform_indices = @transform_0, window_bounds = array<i64: 8, 256>}, {transform_indices = @transform_1, window_bounds = array<i64: 8, 256>}]} {
    %c0 = arith.constant 0 : index
    %c0_0 = arith.constant 0 : index
    %0 = vector.load %arg2[%c0, %c0_0] : memref<8x256xf32, #tpu.memory_space<vmem>>, vector<8x256xf32>
    %c0_1 = arith.constant 0 : index
    %c0_2 = arith.constant 0 : index
    %1 = vector.load %arg3[%c0_1, %c0_2] : memref<8x256xf32, #tpu.memory_space<vmem>>, vector<8x256xf32>
    tpu.vector_store %arg3[%c0_1, %c0_2], %0 {strides = array<i32>} : memref<8x256xf32, #tpu.memory_space<vmem>>, vector<8x256xf32>,
    return
  }
  func.func @transform_0(%arg0: i32, %arg1: i32) -> (i32, i32) {
    %c0_i32 = arith.constant 0 : i32
    return %arg0, %arg1 : i32, i32
  }
  func.func @transform_1(%arg0: i32, %arg1: i32) -> (i32, i32) {
    %c0_i32 = arith.constant 0 : i32
    return %arg0, %arg1 : i32, i32
  }
}

</mosaic_0001>

<llo_original>
// kernel: tpu_custom_call.1
$region0: #{tpu_custom_call.1}
  #allocation0 [shape = 'u32[]', space=smem, size = 0x4, offset = 0x4, fixed_abs, tag = 'smem constant byte address 0x4 - core index']
  #allocation1 [shape = 'u32[144,128]{1,0:T(1,128)}', space=vmem, size = 0x12000, scoped, tag = 'internal scratch']
  %s0 = inlined_call_operand.hbm [shape: f32[8,256], index: 0, kind: input, shape index: {}]
  %s1 = inlined_call_operand.hbm [shape: f32[8,256], index: 1, kind: output, shape index: {}]
  %s2 = sld [smem:[#allocation0]]
  $region18: #{tpu_custom_call.1} parent=0
    _
  %s4 = ssub.s32 1, %s2
  %s5 = scalar_select 0, %s4, %s2
  $region1: #{tpu_custom_call.1} parent=0
    #allocation2 [shape = 'u8[8192]{0}', space=vmem, size = 0x2000, scoped, tag = 'input window, operand 0, single buffered']
    #allocation3 [shape = 's32[1]{0}', space=sflag, size = 0x4, scoped, tag = 'scoped memory for tpu_custom_call.1']
    #allocation4 [shape = 's32[1]{0}', space=sflag, size = 0x4, scoped, tag = 'scoped memory for tpu_custom_call.1']
    #allocation5 [shape = 'u8[8192]{0}', space=vmem, size = 0x2000, scoped, tag = 'output window, operand 0, single buffered']
    %6 = vsyncpa [#allocation3], 0
    %7 = vsyncpa [#allocation4], 0
    // Predicated region
    $region2: #{tpu_custom_call.1} parent=1 // pred_check
      _
    $region3: #{tpu_custom_call.1} parent=1 // pred_check_branch
      %9 = sbr.rel (0) target = $region5
    $region4: #{tpu_custom_call.1} parent=1 // pred_region
      %s11 = ssub.s32 256, 256
      %12 = vsyncadd [#allocation3], %s11
      %s14 = sshll.u32 [#allocation2], 4
      %s15 = int_to_ptr.vmem [resolvable:$true] %s14
      %17 = dma.hbm_to_vmem [thread:$0]  %s0, 256, %s15, [#allocation3]
    $region5: #{tpu_custom_call.1} parent=1 // pred_fallthru
      _
    // Predicated region
    $region6: #{tpu_custom_call.1} parent=1 // pred_check
      _
    $region7: #{tpu_custom_call.1} parent=1 // pred_check_branch
      %19 = sbr.rel (0) target = $region9
    $region8: #{tpu_custom_call.1} parent=1 // pred_region
      %20 = dma.done [#allocation3], 256
    $region9: #{tpu_custom_call.1} parent=1 // pred_fallthru
      _
    %v21 = vld [vmem:[#allocation2] sm:$0xff]
    %v22 = vld [vmem:[#allocation2 + $0x8] sm:$0xff]
    %23 = vst [vmem:[#allocation5] sm:$0xff] %v21
    %24 = vst [vmem:[#allocation5 + $0x8] sm:$0xff] %v22
    // Predicated region
    $region10: #{tpu_custom_call.1} parent=1 // pred_check
      _
    $region11: #{tpu_custom_call.1} parent=1 // pred_check_branch
      %26 = sbr.rel (0) target = $region13
    $region12: #{tpu_custom_call.1} parent=1 // pred_region
      %s28 = ssub.s32 256, 256
      %29 = vsyncadd [#allocation4], %s28
      %s31 = sshll.u32 [#allocation5], 4
      %s32 = int_to_ptr.vmem [resolvable:$true] %s31
      %34 = dma.vmem_to_hbm [thread:$0]  %s32, 256, %s1, [#allocation4]
    $region13: #{tpu_custom_call.1} parent=1 // pred_fallthru
      _
    // Predicated region
    $region14: #{tpu_custom_call.1} parent=1 // pred_check
      _
    $region15: #{tpu_custom_call.1} parent=1 // pred_check_branch
      %36 = sbr.rel (0) target = $region17
    $region16: #{tpu_custom_call.1} parent=1 // pred_region
      %37 = dma.done [#allocation4], 256
    $region17: #{tpu_custom_call.1} parent=1 // pred_fallthru
      _
    %38 = vsyncpa [#allocation3], 1
    %39 = vsyncpa [#allocation4], 1

</llo_original>
